<compile_context>
chip_gen: v6e
topology: v6e:2x2x1
jax: 0.10.0
libtpu: 0.0.40
codegen_flags: <defaults>
</compile_context>

<pallas_src>
import functools
import math

import jax
import jax.numpy as jnp
from jax.experimental import pallas as pl
from jax.experimental.pallas import tpu as pltpu


# --------------------------------------------------------------- utilities

def _pick_tile(dim, desired, align):
    """Largest tile <= desired that exactly divides `dim` and is `align`-aligned.

    Falls back to the full dimension (block == array extent, always legal) when
    no aligned divisor exists, so tiny test shapes stay valid while large GPT2
    shapes (multiples of 128/256) get real tiling + pipelining.
    """
    if dim <= desired:
        return dim
    t = (desired // align) * align
    while t >= align:
        if dim % t == 0:
            return t
        t -= align
    return dim


_SQRT_2_OVER_PI = math.sqrt(2.0 / math.pi)


def _gelu_new_f32(x):
    # GPT2 "new" gelu: 0.5*x*(1+tanh(sqrt(2/pi)*(x+0.044715*x^3)))  (f32 math)
    return 0.5 * x * (1.0 + jnp.tanh(_SQRT_2_OVER_PI * (x + 0.044715 * x * x * x)))


# --------------------------------------------------------------- LayerNorm

def _layernorm_kernel(x_ref, g_ref, b_ref, o_ref, *, eps):
    x = x_ref[...].astype(jnp.float32)
    mean = jnp.mean(x, axis=-1, keepdims=True)
    xc = x - mean
    var = jnp.mean(xc * xc, axis=-1, keepdims=True)
    y = xc * jax.lax.rsqrt(var + eps)
    y = y * g_ref[...].astype(jnp.float32) + b_ref[...].astype(jnp.float32)
    o_ref[...] = y.astype(o_ref.dtype)


def layernorm(x, gamma, beta, eps=1e-5, *, block_rows=512):
    M, C = x.shape
    tm = _pick_tile(M, block_rows, 8)
    return pl.pallas_call(
        functools.partial(_layernorm_kernel, eps=eps),
        out_shape=jax.ShapeDtypeStruct((M, C), x.dtype),
        grid=(M // tm,),
        in_specs=[pl.BlockSpec((tm, C), lambda i: (i, 0)),
                  pl.BlockSpec((1, C), lambda i: (0, 0)),
                  pl.BlockSpec((1, C), lambda i: (0, 0))],
        out_specs=pl.BlockSpec((tm, C), lambda i: (i, 0)),
        compiler_params=pltpu.CompilerParams(
            dimension_semantics=("parallel",)),
    )(x, gamma.reshape(1, C), beta.reshape(1, C))


# ------------------------------------------------- Conv1D (matmul+bias+act)

def _conv1d_kernel(*refs, activation, has_residual, return_pre):
    if has_residual:
        if return_pre:
            x_ref, w_ref, b_ref, r_ref, o_pre_ref, o_ref, acc_ref = refs
        else:
            x_ref, w_ref, b_ref, r_ref, o_ref, acc_ref = refs
            o_pre_ref = None
    else:
        x_ref, w_ref, b_ref, o_ref, acc_ref = refs
        r_ref = None
        o_pre_ref = None

    k = pl.program_id(2)

    @pl.when(k == 0)
    def _init():
        acc_ref[...] = jnp.zeros_like(acc_ref)

    # MXU consumes the operand dtype (e.g. bf16/f32) with f32 accumulation.
    acc_ref[...] += jnp.dot(x_ref[...], w_ref[...],
                            preferred_element_type=jnp.float32)

    @pl.when(k == pl.num_programs(2) - 1)
    def _finalize():
        y = acc_ref[...] + b_ref[...].astype(jnp.float32)
        if activation == "gelu_new":
            y = _gelu_new_f32(y)
        if o_pre_ref is not None:
            o_pre_ref[...] = y.astype(o_pre_ref.dtype)
        if r_ref is not None:
            y = y + r_ref[...].astype(jnp.float32)
        o_ref[...] = y.astype(o_ref.dtype)


def conv1d(x, w, b, activation=None, residual=None, return_pre_residual=False,
           *, tm=256, tn=512, tk=512):
    """GPT2 Conv1D: y = act(x @ w + b) [+ residual], x:(M,K) w:(K,N) b:(N,).

    If `residual` is given the residual add is fused into the last K step.
    If additionally `return_pre_residual`, returns (y, y + residual).
    """
    M, K = x.shape
    Kw, N = w.shape
    assert K == Kw
    tm = _pick_tile(M, tm, 8)
    tn = _pick_tile(N, tn, 128)
    tk = _pick_tile(K, tk, 128)
    grid = (M // tm, N // tn, K // tk)

    in_specs = [pl.BlockSpec((tm, tk), lambda i, j, k: (i, k)),
                pl.BlockSpec((tk, tn), lambda i, j, k: (k, j)),
                pl.BlockSpec((1, tn), lambda i, j, k: (0, j))]
    args = [x, w, b.reshape(1, N)]
    if residual is not None:
        # Block index independent of k -> fetched once per (i, j) tile.
        in_specs.append(pl.BlockSpec((tm, tn), lambda i, j, k: (i, j)))
        args.append(residual)

    out_block = pl.BlockSpec((tm, tn), lambda i, j, k: (i, j))
    if residual is not None and return_pre_residual:
        out_shape = (jax.ShapeDtypeStruct((M, N), x.dtype),
                     jax.ShapeDtypeStruct((M, N), x.dtype))
        out_specs = [out_block, out_block]
    else:
        out_shape = jax.ShapeDtypeStruct((M, N), x.dtype)
        out_specs = out_block

    return pl.pallas_call(
        functools.partial(_conv1d_kernel, activation=activation,
                          has_residual=residual is not None,
                          return_pre=return_pre_residual),
        out_shape=out_shape,
        grid=grid,
        in_specs=in_specs,
        out_specs=out_specs,
        scratch_shapes=[pltpu.VMEM((tm, tn), jnp.float32)],
        compiler_params=pltpu.CompilerParams(
            dimension_semantics=("parallel", "parallel", "arbitrary")),
    )(*args)


# ----------------------------------------------- causal (flash) attention

def _flash_attn_kernel(q_ref, k_ref, v_ref, o_ref, m_sc, l_sc, acc_sc, *,
                       scale, num_heads, head_dim, blk):
    qi = pl.program_id(1)
    ki = pl.program_id(2)
    H, Dh, t = num_heads, head_dim, blk

    @pl.when(ki == 0)
    def _init():
        m_sc[...] = jnp.full_like(m_sc, -jnp.inf)
        l_sc[...] = jnp.zeros_like(l_sc)
        acc_sc[...] = jnp.zeros_like(acc_sc)

    def update(masked):
        q = q_ref[0].reshape(t, H, Dh)
        k = k_ref[0].reshape(t, H, Dh)
        v = v_ref[0].reshape(t, H, Dh)

        # All heads at once; contraction over Dh without an explicit k.T.
        s = jnp.einsum("qhd,khd->hqk", q, k,
                       preferred_element_type=jnp.float32) * scale

        if masked:
            # Only the diagonal tile needs the causal mask; build it from
            # program_id offsets and broadcast over the head axis.
            row = qi * t + jax.lax.broadcasted_iota(jnp.int32, (t, t), 0)
            col = ki * t + jax.lax.broadcasted_iota(jnp.int32, (t, t), 1)
            s = jnp.where((col <= row)[None, :, :], s,
                          jnp.finfo(jnp.float32).min)

        m_prev = m_sc[...]                                   # (H, t, 1)
        m_new = jnp.maximum(m_prev, jnp.max(s, axis=-1, keepdims=True))
        alpha = jnp.exp(m_prev - m_new)
        p = jnp.exp(s - m_new)                               # (H, t, t)

        l_sc[...] = alpha * l_sc[...] + jnp.sum(p, axis=-1, keepdims=True)
        acc_sc[...] = alpha * acc_sc[...] + jnp.einsum(
            "hqk,khd->hqd", p.astype(v.dtype), v,
            preferred_element_type=jnp.float32)
        m_sc[...] = m_new

    # Strictly-below-diagonal kv tiles: no mask generation / where at all.
    @pl.when(ki < qi)
    def _unmasked():
        update(masked=False)

    # Diagonal tile: causal mask applied.  (Equal q/kv tile sizes guarantee at
    # least one unmasked column per row, so the online softmax stays finite.)
    @pl.when(ki == qi)
    def _masked():
        update(masked=True)

    # Strictly-above-diagonal tiles (ki > qi) contribute nothing -> skipped.

    @pl.when(ki == pl.num_programs(2) - 1)
    def _finalize():
        out = acc_sc[...] / l_sc[...]                        # (H, t, Dh)
        out = out.transpose(1, 0, 2).reshape(t, H * Dh)      # lane-dense (t, C)
        o_ref[0] = out.astype(o_ref.dtype)


def causal_attention(q, k, v, scale, num_heads, *, block_t=256):
    """q, k, v: (B, T, C) with heads packed along C -> (B, T, C)."""
    B, T, C = q.shape
    H = num_heads
    Dh = C // H
    t = _pick_tile(T, block_t, 8)
    nq = T // t
    nk = T // t

    # kv tiles with ki > qi are never read: clamp the block index so the
    # pipeliner sees an unchanged index and skips the HBM->VMEM DMA entirely.
    def kv_map(b, qi, ki):
        return (b, jnp.minimum(qi, ki), 0)

    return pl.pallas_call(
        functools.partial(_flash_attn_kernel, scale=scale, num_heads=H,
                          head_dim=Dh, blk=t),
        out_shape=jax.ShapeDtypeStruct((B, T, C), q.dtype),
        grid=(B, nq, nk),
        in_specs=[pl.BlockSpec((1, t, C), lambda b, qi, ki: (b, qi, 0)),
                  pl.BlockSpec((1, t, C), kv_map),
                  pl.BlockSpec((1, t, C), kv_map)],
        out_specs=pl.BlockSpec((1, t, C), lambda b, qi, ki: (b, qi, 0)),
        scratch_shapes=[pltpu.VMEM((H, t, 1), jnp.float32),   # running max
                        pltpu.VMEM((H, t, 1), jnp.float32),   # running denom
                        pltpu.VMEM((H, t, Dh), jnp.float32)],  # running acc
        compiler_params=pltpu.CompilerParams(
            dimension_semantics=("parallel", "parallel", "arbitrary")),
    )(q, k, v)


# ------------------------------------------------------------------ params

def init_params(key, cfg):
    C = cfg["hidden_size"]
    inner = cfg["n_inner"]
    std = 0.02

    def normal(k, shape):
        return (std * jax.random.normal(k, shape)).astype(jnp.float32)

    keys = jax.random.split(key, 2 + 4 * cfg["num_hidden_layers"])
    params = {
        "wte": normal(keys[0], (cfg["vocab_size"], C)),
        "wpe": normal(keys[1], (cfg["max_position_embeddings"], C)),
        "ln_f_g": jnp.ones((C,), jnp.float32),
        "ln_f_b": jnp.zeros((C,), jnp.float32),
        "blocks": [],
    }
    for l in range(cfg["num_hidden_layers"]):
        k0, k1, k2, k3 = keys[2 + 4 * l: 2 + 4 * (l + 1)]
        params["blocks"].append({
            "ln1_g": jnp.ones((C,), jnp.float32),
            "ln1_b": jnp.zeros((C,), jnp.float32),
            "c_attn_w": normal(k0, (C, 3 * C)),
            "c_attn_b": jnp.zeros((3 * C,), jnp.float32),
            "attn_proj_w": normal(k1, (C, C)),
            "attn_proj_b": jnp.zeros((C,), jnp.float32),
            "ln2_g": jnp.ones((C,), jnp.float32),
            "ln2_b": jnp.zeros((C,), jnp.float32),
            "c_fc_w": normal(k2, (C, inner)),
            "c_fc_b": jnp.zeros((inner,), jnp.float32),
            "mlp_proj_w": normal(k3, (inner, C)),
            "mlp_proj_b": jnp.zeros((C,), jnp.float32),
        })
    return params


# ------------------------------------------------------------------ forward

def gpt2_forward(params, input_ids, cfg):
    B, T = input_ids.shape
    C = cfg["hidden_size"]
    H = cfg["num_attention_heads"]
    Dh = C // H
    eps = cfg["layer_norm_epsilon"]

    # embeddings (gather = glue)
    h = jnp.take(params["wte"], input_ids, axis=0) + params["wpe"][:T]  # (B,T,C)
    # TODO(synk): dropout layers (embd/attn/resid) are identity here (eval mode).
    h2 = h.reshape(B * T, C)

    scale = 1.0 / float(Dh) ** 0.5   # scale_attn_weights

    kan_inputs, kan_targets = [], []
    for blk in params["blocks"]:
        # ---- attention sub-block
        resid = h2
        x = layernorm(h2, blk["ln1_g"], blk["ln1_b"], eps)
        qkv = conv1d(x, blk["c_attn_w"], blk["c_attn_b"])                # (BT, 3C)
        q, k, v = jnp.split(qkv, 3, axis=-1)
        q = q.reshape(B, T, C)
        k = k.reshape(B, T, C)
        v = v.reshape(B, T, C)
        attn = causal_attention(q, k, v, scale, H).reshape(B * T, C)
        # residual add fused into the projection matmul
        h2 = conv1d(attn, blk["attn_proj_w"], blk["attn_proj_b"], residual=resid)

        # ---- mlp sub-block
        resid = h2
        x = layernorm(h2, blk["ln2_g"], blk["ln2_b"], eps)
        kan_inputs.append(x.reshape(B, T, C))
        ff = conv1d(x, blk["c_fc_w"], blk["c_fc_b"], activation="gelu_new")
        # projection emits the pre-residual output (kan_target) AND the
        # residual-added hidden state in a single fused pass.
        ff_out, h2 = conv1d(ff, blk["mlp_proj_w"], blk["mlp_proj_b"],
                            residual=resid, return_pre_residual=True)
        kan_targets.append(ff_out.reshape(B, T, C))

    h_final = layernorm(h2, params["ln_f_g"], params["ln_f_b"], eps).reshape(B, T, C)
    return dict(last_hidden_states=h_final,
                kan_inputs=kan_inputs,
                kan_targets=kan_targets)


# ---------------------------------------------------------- pure-JAX reference

def _reference_forward(params, input_ids, cfg):
    B, T = input_ids.shape
    C = cfg["hidden_size"]
    H = cfg["num_attention_heads"]
    Dh = C // H
    eps = cfg["layer_norm_epsilon"]

    def ln(x, g, b):
        m = jnp.mean(x, -1, keepdims=True)
        v = jnp.mean((x - m) ** 2, -1, keepdims=True)
        return (x - m) * jax.lax.rsqrt(v + eps) * g + b

    h = jnp.take(params["wte"], input_ids, axis=0) + params["wpe"][:T]
    kan_inputs, kan_targets = [], []
    for blk in params["blocks"]:
        resid = h
        x = ln(h, blk["ln1_g"], blk["ln1_b"])
        qkv = x @ blk["c_attn_w"] + blk["c_attn_b"]
        q, k, v = jnp.split(qkv, 3, axis=-1)

        def split_heads(t):
            return t.reshape(B, T, H, Dh).transpose(0, 2, 1, 3)

        q, k, v = split_heads(q), split_heads(k), split_heads(v)
        s = jnp.einsum("bhqd,bhkd->bhqk", q, k) / float(Dh) ** 0.5
        mask = jnp.tril(jnp.ones((T, T), bool))
        s = jnp.where(mask[None, None], s, jnp.finfo(jnp.float32).min)
        p = jax.nn.softmax(s, axis=-1)
        a = jnp.einsum("bhqk,bhkd->bhqd", p, v)
        a = a.transpose(0, 2, 1, 3).reshape(B, T, C)
        a = a @ blk["attn_proj_w"] + blk["attn_proj_b"]
        h = a + resid

        resid = h
        x = ln(h, blk["ln2_g"], blk["ln2_b"])
        kan_inputs.append(x)
        ff = x @ blk["c_fc_w"] + blk["c_fc_b"]
        ff = _gelu_new_f32(ff)
        ff = ff @ blk["mlp_proj_w"] + blk["mlp_proj_b"]
        kan_targets.append(ff)
        h = resid + ff
    h = ln(h, params["ln_f_g"], params["ln_f_b"])
    return dict(last_hidden_states=h, kan_inputs=kan_inputs,
                kan_targets=kan_targets)


# ------------------------------------------------------------------ main

if __name__ == "__main__":
    cfg = dict(
        vocab_size=64,
        max_position_embeddings=16,
        hidden_size=32,
        num_attention_heads=4,
        num_hidden_layers=2,
        n_inner=4 * 32,
        layer_norm_epsilon=1e-5,
    )

    key = jax.random.PRNGKey(0)
    pkey, ikey = jax.random.split(key)
    params = init_params(pkey, cfg)

    B, T = 2, 8
    input_ids = jax.random.randint(ikey, (B, T), 0, cfg["vocab_size"],
                                   dtype=jnp.int32)

    out = gpt2_forward(params, input_ids, cfg)
    jax.block_until_ready(out["last_hidden_states"])
    for t in out["kan_inputs"] + out["kan_targets"]:
        jax.block_until_ready(t)

    assert out["last_hidden_states"].shape == (B, T, cfg["hidden_size"])
    assert len(out["kan_inputs"]) == cfg["num_hidden_layers"]
    assert len(out["kan_targets"]) == cfg["num_hidden_layers"]

    # numerical check against a pure-JAX reference of the PyTorch math
    ref = _reference_forward(params, input_ids, cfg)
    assert jnp.allclose(out["last_hidden_states"], ref["last_hidden_states"],
                        atol=2e-3, rtol=2e-3)
    for a, b in zip(out["kan_inputs"], ref["kan_inputs"]):
        assert jnp.allclose(a, b, atol=2e-3, rtol=2e-3)
    for a, b in zip(out["kan_targets"], ref["kan_targets"]):
        assert jnp.allclose(a, b, atol=2e-3, rtol=2e-3)

    print("KERNEL_OK")
</pallas_src>

<mosaic_0001>
module attributes {stable_mosaic.version = 11 : i64} {
  func.func @_layernorm_kernel(%arg0: i32, %arg1: memref<16x32xf32, #tpu.memory_space<vmem>>, %arg2: memref<1x32xf32, #tpu.memory_space<vmem>>, %arg3: memref<1x32xf32, #tpu.memory_space<vmem>>, %arg4: memref<16x32xf32, #tpu.memory_space<vmem>>) attributes {dimension_semantics = [#tpu.dimension_semantics<parallel>], iteration_bounds = array<i64: 1>, scalar_prefetch = 0 : i64, scratch_operands = 0 : i64, tpu.core_type = #tpu.core_type<tc>, window_params = [{transform_indices = @transform_0, window_bounds = array<i64: 16, 32>}, {pipeline_mode = #tpu.pipeline_mode<synchronous>, transform_indices = @transform_1, window_bounds = array<i64: 1, 32>}, {pipeline_mode = #tpu.pipeline_mode<synchronous>, transform_indices = @transform_2, window_bounds = array<i64: 1, 32>}, {transform_indices = @transform_3, window_bounds = array<i64: 16, 32>}]} {
    %c0 = arith.constant 0 : index
    %c0_0 = arith.constant 0 : index
    %0 = vector.load %arg1[%c0, %c0_0] : memref<16x32xf32, #tpu.memory_space<vmem>>, vector<16x32xf32>
    %cst = arith.constant dense<0.000000e+00> : vector<16xf32>
    %1 = vector.multi_reduction <add>, %0, %cst [1] : vector<16x32xf32> to vector<16xf32>
    %2 = vector.shape_cast %1 : vector<16xf32> to vector<16x1xf32>
    %cst_1 = arith.constant 3.200000e+01 : f32
    %3 = vector.broadcast %cst_1 : f32 to vector<16x1xf32>
    %4 = arith.divf %2, %3 : vector<16x1xf32>
    %5 = vector.broadcast %4 : vector<16x1xf32> to vector<16x32xf32>
    %6 = arith.subf %0, %5 : vector<16x32xf32>
    %7 = arith.mulf %6, %6 : vector<16x32xf32>
    %cst_2 = arith.constant dense<0.000000e+00> : vector<16xf32>
    %8 = vector.multi_reduction <add>, %7, %cst_2 [1] : vector<16x32xf32> to vector<16xf32>
    %9 = vector.shape_cast %8 : vector<16xf32> to vector<16x1xf32>
    %cst_3 = arith.constant 3.200000e+01 : f32
    %10 = vector.broadcast %cst_3 : f32 to vector<16x1xf32>
    %11 = arith.divf %9, %10 : vector<16x1xf32>
    %cst_4 = arith.constant 9.99999974E-6 : f32
    %12 = vector.broadcast %cst_4 : f32 to vector<16x1xf32>
    %13 = arith.addf %11, %12 : vector<16x1xf32>
    %14 = math.rsqrt %13 : vector<16x1xf32>
    %15 = vector.broadcast %14 : vector<16x1xf32> to vector<16x32xf32>
    %16 = arith.mulf %6, %15 : vector<16x32xf32>
    %c0_5 = arith.constant 0 : index
    %c0_6 = arith.constant 0 : index
    %17 = vector.load %arg2[%c0_5, %c0_6] : memref<1x32xf32, #tpu.memory_space<vmem>>, vector<1x32xf32>
    %18 = vector.broadcast %17 : vector<1x32xf32> to vector<16x32xf32>
    %19 = arith.mulf %16, %18 : vector<16x32xf32>
    %c0_7 = arith.constant 0 : index
    %c0_8 = arith.constant 0 : index
    %20 = vector.load %arg3[%c0_7, %c0_8] : memref<1x32xf32, #tpu.memory_space<vmem>>, vector<1x32xf32>
    %21 = vector.broadcast %20 : vector<1x32xf32> to vector<16x32xf32>
    %22 = arith.addf %19, %21 : vector<16x32xf32>
    %c0_9 = arith.constant 0 : index
    %c0_10 = arith.constant 0 : index
    %23 = vector.load %arg4[%c0_9, %c0_10] : memref<16x32xf32, #tpu.memory_space<vmem>>, vector<16x32xf32>
    tpu.vector_store %arg4[%c0_9, %c0_10], %22 {strides = array<i32>} : memref<16x32xf32, #tpu.memory_space<vmem>>, vector<16x32xf32>,
    return
  }
  func.func @transform_0(%arg0: i32) -> (i32, i32) {
    %c0_i32 = arith.constant 0 : i32
    %c0_i32_0 = arith.constant 0 : i32
    return %arg0, %c0_i32 : i32, i32
  }
  func.func @transform_1(%arg0: i32) -> (i32, i32) {
    %c0_i32 = arith.constant 0 : i32
    %c0_i32_0 = arith.constant 0 : i32
    %c0_i32_1 = arith.constant 0 : i32
    return %c0_i32, %c0_i32_0 : i32, i32
  }
  func.func @transform_2(%arg0: i32) -> (i32, i32) {
    %c0_i32 = arith.constant 0 : i32
    %c0_i32_0 = arith.constant 0 : i32
    %c0_i32_1 = arith.constant 0 : i32
    return %c0_i32, %c0_i32_0 : i32, i32
  }
  func.func @transform_3(%arg0: i32) -> (i32, i32) {
    %c0_i32 = arith.constant 0 : i32
    %c0_i32_0 = arith.constant 0 : i32
    return %arg0, %c0_i32 : i32, i32
  }
}

</mosaic_0001>

<llo_original>
// kernel: tpu_custom_call.1
$region0: #{tpu_custom_call.1}
  #allocation0 [shape = 'u32[]', space=smem, size = 0x4, offset = 0x4, fixed_abs, tag = 'smem constant byte address 0x4 - core index']
  #allocation1 [shape = 'u32[144,128]{1,0:T(1,128)}', space=vmem, size = 0x12000, scoped, tag = 'internal scratch']
  %s0 = inlined_call_operand.hbm [shape: f32[16,32], index: 0, kind: input, shape index: {}]
  %s1 = inlined_call_operand.vmem [shape: f32[1,32], index: 1, kind: input, shape index: {}]
  %s2 = inlined_call_operand.vmem [shape: f32[1,32], index: 2, kind: input, shape index: {}]
  %s3 = inlined_call_operand.hbm [shape: f32[16,32], index: 3, kind: output, shape index: {}]
  %s4 = sld [smem:[#allocation0]]
  $region26: #{tpu_custom_call.1} parent=0
    _
  %s6 = ssub.s32 1, %s4
  %s7 = scalar_select 0, %s6, %s4
  $region1: #{tpu_custom_call.1} parent=0
    #allocation2 [shape = 'u8[8192]{0}', space=vmem, size = 0x2000, scoped, tag = 'input window, operand 0, single buffered']
    #allocation3 [shape = 's32[1]{0}', space=sflag, size = 0x4, scoped, tag = 'scoped memory for tpu_custom_call.1']
    #allocation4 [shape = 's32[1]{0}', space=sflag, size = 0x4, scoped, tag = 'scoped memory for tpu_custom_call.1']
    #allocation5 [shape = 'u8[8192]{0}', space=vmem, size = 0x2000, scoped, tag = 'output window, operand 0, single buffered']
    %8 = vsyncpa [#allocation3], 0
    %9 = vsyncpa [#allocation4], 0
    // Predicated region
    $region2: #{tpu_custom_call.1} parent=1 // pred_check
      _
    $region3: #{tpu_custom_call.1} parent=1 // pred_check_branch
      %11 = sbr.rel (0) target = $region5
    $region4: #{tpu_custom_call.1} parent=1 // pred_region
      %s13 = ssub.s32 256, 256
      %14 = vsyncadd [#allocation3], %s13
      %s15 = sshll.u32 [#allocation2], 4
      %s16 = int_to_ptr.vmem [resolvable:$true] %s15
      %21 = dma.hbm_to_vmem [thread:$0]  %s0, 256, %s16, [#allocation3], 128, 128, 8
    $region5: #{tpu_custom_call.1} parent=1 // pred_fallthru
      _
    // Predicated region
    $region6: #{tpu_custom_call.1} parent=1 // pred_check
      _
    $region7: #{tpu_custom_call.1} parent=1 // pred_check_branch
      %23 = sbr.rel (0) target = $region9
    $region8: #{tpu_custom_call.1} parent=1 // pred_region
      _
    $region9: #{tpu_custom_call.1} parent=1 // pred_fallthru
      _
    // Predicated region
    $region10: #{tpu_custom_call.1} parent=1 // pred_check
      _
    $region11: #{tpu_custom_call.1} parent=1 // pred_check_branch
      %25 = sbr.rel (0) target = $region13
    $region12: #{tpu_custom_call.1} parent=1 // pred_region
      _
    $region13: #{tpu_custom_call.1} parent=1 // pred_fallthru
      _
    // Predicated region
    $region14: #{tpu_custom_call.1} parent=1 // pred_check
      _
    $region15: #{tpu_custom_call.1} parent=1 // pred_check_branch
      %27 = sbr.rel (0) target = $region17
    $region16: #{tpu_custom_call.1} parent=1 // pred_region
      %28 = dma.done [#allocation3], 256
    $region17: #{tpu_custom_call.1} parent=1 // pred_fallthru
      _
    %v29 = vld [vmem:[#allocation2] sm:$0xff]
    %v30 = vld [vmem:[#allocation2 + $0x8] sm:$0xff]
    %vm31 = vcmask 261120
    %v32 = vsel %vm31, %v29, 0.0
    %33 = vadd.xlane.f32.xlu0 %v32
    %v34 = vpop.xlane.xlu0 %33
    %v35 = vsel %vm31, %v30, 0.0
    %36 = vadd.xlane.f32.xlu0 %v35
    %v37 = vpop.xlane.xlu0 %36
    %v38 = vrcp.pop 32.0
    %v39 = vmul.f32 %v34, %v38
    %v40 = vmul.f32 %v37, %v38
    %v41 = vsub.f32 %v29, %v39
    %v42 = vsub.f32 %v30, %v40
    %v43 = vmul.f32 %v41, %v41
    %v44 = vmul.f32 %v42, %v42
    %v45 = vsel %vm31, %v43, 0.0
    %46 = vadd.xlane.f32.xlu0 %v45
    %v47 = vpop.xlane.xlu0 %46
    %v48 = vsel %vm31, %v44, 0.0
    %49 = vadd.xlane.f32.xlu0 %v48
    %v50 = vpop.xlane.xlu0 %49
    %v51 = vmul.f32 %v47, %v38
    %v52 = vmul.f32 %v50, %v38
    %v53 = vadd.f32 %v51, 1e-05
    %v54 = vadd.f32 %v52, 1e-05
    %v55 = vrsqrt.pop %v53
    %v56 = vrsqrt.pop %v54
    %v57 = vmul.f32 %v41, %v55
    %v58 = vmul.f32 %v42, %v56
    %v59 = vld [vmem:[%s1] sm:$0x1]
    %v61 = vlaneseq
    %v62 = vshrl.u32 %v61, 7
    %v63 = vsub.s32 0, %v62
    %v64 = vrot.slane %v59, %v63
    %v66 = vmul.f32 %v57, %v64
    %v67 = vmul.f32 %v58, %v64
    %v68 = vld [vmem:[%s2] sm:$0x1]
    %v70 = vlaneseq
    %v71 = vshrl.u32 %v70, 7
    %v72 = vsub.s32 0, %v71
    %v73 = vrot.slane %v68, %v72
    %v75 = vadd.f32 %v66, %v73
    %v76 = vadd.f32 %v67, %v73
    %77 = vst.msk [vmem:[#allocation5] sm:$0xff] %vm31, %v75
    %78 = vst.msk [vmem:[#allocation5 + $0x8] sm:$0xff] %vm31, %v76
    // Predicated region
    $region18: #{tpu_custom_call.1} parent=1 // pred_check
      _
    $region19: #{tpu_custom_call.1} parent=1 // pred_check_branch
      %80 = sbr.rel (0) target = $region21
    $region20: #{tpu_custom_call.1} parent=1 // pred_region
      %s82 = ssub.s32 256, 256
      %83 = vsyncadd [#allocation4], %s82
      %s84 = sshll.u32 [#allocation5], 4
      %s85 = int_to_ptr.vmem [resolvable:$true] %s84
      %90 = dma.vmem_to_hbm [thread:$0]  %s85, 256, %s3, [#allocation4], 128, 128, 8
    $region21: #{tpu_custom_call.1} parent=1 // pred_fallthru
      _
    // Predicated region
    $region22: #{tpu_custom_call.1} parent=1 // pred_check
      _
    $region23: #{tpu_custom_call.1} parent=1 // pred_check_branch
      %92 = sbr.rel (0) target = $region25
    $region24: #{tpu_custom_call.1} parent=1 // pred_region
      %93 = dma.done [#allocation4], 256
    $region25: #{tpu_custom_call.1} parent=1 // pred_fallthru
      _
    %94 = vsyncpa [#allocation3], 1
    %95 = vsyncpa [#allocation4], 1

</llo_original>
